<compile_context>
chip_gen: v5e
topology: v5e:2x2
jax: 0.10.0
libtpu: 0.0.40
codegen_flags: <defaults>
</compile_context>

<pallas_src>
import jax
import jax.numpy as jnp
from jax.experimental import pallas as pl
from jax.experimental.pallas import tpu as pltpu


def _round_up(x, m):
    return (x + m - 1) // m * m


def mlp_kernel(x_ref, w1_ref, b1_ref, w2_ref, b2_ref, o_ref):
    # First linear: bf16 operands, f32 accumulation on the MXU.
    h = jnp.dot(x_ref[...], w1_ref[...], preferred_element_type=jnp.float32)
    # Bias + ReLU in f32 on the VPU (b1 is (1, H): broadcasts over batch rows).
    h = jnp.maximum(h + b1_ref[...], 0.0)
    # Second linear: cast h back to the MXU dtype, accumulate in f32.
    y = jnp.dot(h.astype(w2_ref.dtype), w2_ref[...],
                preferred_element_type=jnp.float32)
    y = y + b2_ref[...]          # b2 is (1, O)
    o_ref[...] = y.astype(o_ref.dtype)


# Conservative budget: v7x has only 64 MiB physical VMEM per TensorCore.
_VMEM_BUDGET = 48 * 1024 * 1024


def _vmem_demand(bt, in_pad, hid_pad, out_pad, act_bytes, out_bytes, w_bytes):
    weights = (in_pad * hid_pad + hid_pad * out_pad) * w_bytes   # single-buffered
    biases = (hid_pad + out_pad) * 4                              # f32, single-buffered
    x_tiles = 2 * bt * in_pad * act_bytes                         # double-buffered
    o_tiles = 2 * bt * out_pad * out_bytes                        # double-buffered
    h_live = bt * hid_pad * (4 + w_bytes)                         # f32 h + bf16 copy
    return weights + biases + x_tiles + o_tiles + h_live


def mlp_forward(x, w1, b1, w2, b2, *, batch_tile=None, use_bf16=True):
    """x: [B, in_dim]  w1: [in_dim, hidden]  b1: [hidden]
       w2: [hidden, out_dim]  b2: [out_dim]  ->  [B, out_dim]"""
    B, in_dim = x.shape
    hidden = w1.shape[1]
    out_dim = w2.shape[1]
    out_dtype = x.dtype

    # Lane-dense / MXU-friendly padding of the feature dims.
    in_pad = _round_up(in_dim, 128)
    hid_pad = _round_up(hidden, 128)
    out_pad = _round_up(out_dim, 128)

    mxu_dtype = jnp.bfloat16 if use_bf16 else jnp.float32
    w_bytes = 2 if use_bf16 else 4
    act_bytes = w_bytes
    out_bytes = jnp.dtype(out_dtype).itemsize

    # Pick a batch tile: big enough to pipeline, small enough to fit VMEM.
    if batch_tile is None:
        batch_tile = 512
    batch_tile = min(batch_tile, _round_up(B, 8))
    batch_tile = max(8, (batch_tile // 8) * 8)
    while (batch_tile > 8 and
           _vmem_demand(batch_tile, in_pad, hid_pad, out_pad,
                        act_bytes, out_bytes, w_bytes) > _VMEM_BUDGET):
        batch_tile = max(8, ((batch_tile // 2) // 8) * 8)
    # NOTE: for very large hidden dims (resident weights approaching the VMEM
    # budget), a hidden-dim grid axis with an f32 accumulator would be needed;
    # batch-tile shrinking covers typical MLP classifier sizes.

    B_pad = _round_up(B, batch_tile)
    grid = (B_pad // batch_tile,)

    # Zero-pad inputs/params (padded rows/cols contribute exactly zero).
    xp = jnp.zeros((B_pad, in_pad), mxu_dtype).at[:B, :in_dim].set(
        x.astype(mxu_dtype))
    w1p = jnp.zeros((in_pad, hid_pad), mxu_dtype).at[:in_dim, :hidden].set(
        w1.astype(mxu_dtype))
    w2p = jnp.zeros((hid_pad, out_pad), mxu_dtype).at[:hidden, :out_dim].set(
        w2.astype(mxu_dtype))
    b1p = jnp.zeros((1, hid_pad), jnp.float32).at[0, :hidden].set(
        b1.astype(jnp.float32))
    b2p = jnp.zeros((1, out_pad), jnp.float32).at[0, :out_dim].set(
        b2.astype(jnp.float32))

    vmem_bytes = _vmem_demand(batch_tile, in_pad, hid_pad, out_pad,
                              act_bytes, out_bytes, w_bytes)
    vmem_limit = int(min(max(vmem_bytes * 1.3, 16 * 1024 * 1024),
                         128 * 1024 * 1024))

    cost = pl.CostEstimate(
        flops=2 * B_pad * in_pad * hid_pad + 2 * B_pad * hid_pad * out_pad,
        transcendentals=0,
        bytes_accessed=(xp.size * act_bytes + w1p.size * w_bytes
                        + w2p.size * w_bytes + b1p.size * 4 + b2p.size * 4
                        + B_pad * out_pad * out_bytes),
    )

    def build(single_buffer_resident):
        resident = ({"pipeline_mode": pl.Buffered(1)}
                    if single_buffer_resident else {})
        return pl.pallas_call(
            mlp_kernel,
            out_shape=jax.ShapeDtypeStruct((B_pad, out_pad), out_dtype),
            grid_spec=pltpu.PrefetchScalarGridSpec(
                num_scalar_prefetch=0,
                grid=grid,
                in_specs=[
                    pl.BlockSpec((batch_tile, in_pad), lambda i: (i, 0)),  # x tile
                    pl.BlockSpec((in_pad, hid_pad), lambda i: (0, 0), **resident),  # W1
                    pl.BlockSpec((1, hid_pad), lambda i: (0, 0), **resident),       # b1
                    pl.BlockSpec((hid_pad, out_pad), lambda i: (0, 0), **resident), # W2
                    pl.BlockSpec((1, out_pad), lambda i: (0, 0), **resident),       # b2
                ],
                out_specs=pl.BlockSpec((batch_tile, out_pad), lambda i: (i, 0)),
            ),
            compiler_params=pltpu.CompilerParams(
                dimension_semantics=("parallel",),
                vmem_limit_bytes=vmem_limit),
            cost_estimate=cost,
        )

    try:
        out = build(True)(xp, w1p, b1p, w2p, b2p)
    except Exception:
        # Fallback if single-buffering resident operands is unsupported here.
        out = build(False)(xp, w1p, b1p, w2p, b2p)

    return out[:B, :out_dim]


def init_params(key, in_dim, hidden_dim, out_dim):
    """Deterministic init matching torch.nn.Linear's shapes (Kaiming-uniform-ish)."""
    k1, k2, k3, k4 = jax.random.split(key, 4)
    lim1 = 1.0 / (in_dim ** 0.5)
    lim2 = 1.0 / (hidden_dim ** 0.5)
    # Stored as [in, out] (transpose of PyTorch's [out, in]).
    w1 = jax.random.uniform(k1, (in_dim, hidden_dim), jnp.float32, -lim1, lim1)
    b1 = jax.random.uniform(k2, (hidden_dim,), jnp.float32, -lim1, lim1)
    w2 = jax.random.uniform(k3, (hidden_dim, out_dim), jnp.float32, -lim2, lim2)
    b2 = jax.random.uniform(k4, (out_dim,), jnp.float32, -lim2, lim2)
    return w1, b1, w2, b2


if __name__ == "__main__":
    # Small shapes consistent with MLP(in_dim, out_dim, hidden_dim)
    B, IN_DIM, HIDDEN, OUT_DIM = 8, 32, 64, 16

    key = jax.random.PRNGKey(0)
    kx, kp = jax.random.split(key)
    x = jax.random.normal(kx, (B, IN_DIM), jnp.float32)
    w1, b1, w2, b2 = init_params(kp, IN_DIM, HIDDEN, OUT_DIM)

    out = mlp_forward(x, w1, b1, w2, b2)
    out = jax.block_until_ready(out)

    # Pure-JAX f32 reference; tolerance loosened for bf16 MXU operands
    # (accumulation stays in f32 inside the kernel).
    ref = jnp.maximum(x @ w1 + b1, 0.0) @ w2 + b2
    assert out.shape == (B, OUT_DIM)
    assert jnp.allclose(out, ref, atol=2e-2, rtol=2e-2), "mismatch vs reference"

    print("KERNEL_OK")
</pallas_src>

<mosaic_0001>
module attributes {stable_mosaic.version = 11 : i64} {
  func.func @mlp_kernel(%arg0: i32, %arg1: memref<8x128xbf16, #tpu.memory_space<vmem>>, %arg2: memref<128x128xbf16, #tpu.memory_space<vmem>>, %arg3: memref<1x128xf32, #tpu.memory_space<vmem>>, %arg4: memref<128x128xbf16, #tpu.memory_space<vmem>>, %arg5: memref<1x128xf32, #tpu.memory_space<vmem>>, %arg6: memref<8x128xf32, #tpu.memory_space<vmem>>) attributes {dimension_semantics = [#tpu.dimension_semantics<parallel>], iteration_bounds = array<i64: 1>, scalar_prefetch = 0 : i64, scratch_operands = 0 : i64, tpu.core_type = #tpu.core_type<tc>, window_params = [{transform_indices = @transform_0, window_bounds = array<i64: 8, 128>}, {pipeline_mode = #tpu.pipeline_mode<synchronous>, transform_indices = @transform_1, window_bounds = array<i64: 128, 128>}, {pipeline_mode = #tpu.pipeline_mode<synchronous>, transform_indices = @transform_2, window_bounds = array<i64: 1, 128>}, {pipeline_mode = #tpu.pipeline_mode<synchronous>, transform_indices = @transform_3, window_bounds = array<i64: 128, 128>}, {pipeline_mode = #tpu.pipeline_mode<synchronous>, transform_indices = @transform_4, window_bounds = array<i64: 1, 128>}, {transform_indices = @transform_5, window_bounds = array<i64: 8, 128>}]} {
    %c0 = arith.constant 0 : index
    %c0_0 = arith.constant 0 : index
    %0 = vector.load %arg1[%c0, %c0_0] : memref<8x128xbf16, #tpu.memory_space<vmem>>, vector<8x128xbf16>
    %c0_1 = arith.constant 0 : index
    %c0_2 = arith.constant 0 : index
    %1 = vector.load %arg2[%c0_1, %c0_2] : memref<128x128xbf16, #tpu.memory_space<vmem>>, vector<128x128xbf16>
    %cst = arith.constant dense<0.000000e+00> : vector<8x128xf32>
    %2 = tpu.matmul %0, %1, %cst {dimension_numbers = #tpu.dot_dimension_numbers<[1], [0], [0], [1], [0, 0, 1, 1], [], []>} : vector<8x128xbf16>, vector<128x128xbf16>, vector<8x128xf32> -> vector<8x128xf32>
    %c0_3 = arith.constant 0 : index
    %c0_4 = arith.constant 0 : index
    %3 = vector.load %arg3[%c0_3, %c0_4] : memref<1x128xf32, #tpu.memory_space<vmem>>, vector<1x128xf32>
    %4 = vector.broadcast %3 : vector<1x128xf32> to vector<8x128xf32>
    %5 = arith.addf %2, %4 : vector<8x128xf32>
    %cst_5 = arith.constant 0.000000e+00 : f32
    %6 = vector.broadcast %cst_5 : f32 to vector<8x128xf32>
    %7 = arith.maximumf %5, %6 : vector<8x128xf32>
    %8 = arith.truncf %7 : vector<8x128xf32> to vector<8x128xbf16>
    %c0_6 = arith.constant 0 : index
    %c0_7 = arith.constant 0 : index
    %9 = vector.load %arg4[%c0_6, %c0_7] : memref<128x128xbf16, #tpu.memory_space<vmem>>, vector<128x128xbf16>
    %cst_8 = arith.constant dense<0.000000e+00> : vector<8x128xf32>
    %10 = tpu.matmul %8, %9, %cst_8 {dimension_numbers = #tpu.dot_dimension_numbers<[1], [0], [0], [1], [0, 0, 1, 1], [], []>} : vector<8x128xbf16>, vector<128x128xbf16>, vector<8x128xf32> -> vector<8x128xf32>
    %c0_9 = arith.constant 0 : index
    %c0_10 = arith.constant 0 : index
    %11 = vector.load %arg5[%c0_9, %c0_10] : memref<1x128xf32, #tpu.memory_space<vmem>>, vector<1x128xf32>
    %12 = vector.broadcast %11 : vector<1x128xf32> to vector<8x128xf32>
    %13 = arith.addf %10, %12 : vector<8x128xf32>
    %c0_11 = arith.constant 0 : index
    %c0_12 = arith.constant 0 : index
    %14 = vector.load %arg6[%c0_11, %c0_12] : memref<8x128xf32, #tpu.memory_space<vmem>>, vector<8x128xf32>
    tpu.vector_store %arg6[%c0_11, %c0_12], %13 {strides = array<i32>} : memref<8x128xf32, #tpu.memory_space<vmem>>, vector<8x128xf32>,
    return
  }
  func.func @transform_0(%arg0: i32) -> (i32, i32) {
    %c0_i32 = arith.constant 0 : i32
    %c0_i32_0 = arith.constant 0 : i32
    return %arg0, %c0_i32 : i32, i32
  }
  func.func @transform_1(%arg0: i32) -> (i32, i32) {
    %c0_i32 = arith.constant 0 : i32
    %c0_i32_0 = arith.constant 0 : i32
    %c0_i32_1 = arith.constant 0 : i32
    return %c0_i32, %c0_i32_0 : i32, i32
  }
  func.func @transform_2(%arg0: i32) -> (i32, i32) {
    %c0_i32 = arith.constant 0 : i32
    %c0_i32_0 = arith.constant 0 : i32
    %c0_i32_1 = arith.constant 0 : i32
    return %c0_i32, %c0_i32_0 : i32, i32
  }
  func.func @transform_3(%arg0: i32) -> (i32, i32) {
    %c0_i32 = arith.constant 0 : i32
    %c0_i32_0 = arith.constant 0 : i32
    %c0_i32_1 = arith.constant 0 : i32
    return %c0_i32, %c0_i32_0 : i32, i32
  }
  func.func @transform_4(%arg0: i32) -> (i32, i32) {
    %c0_i32 = arith.constant 0 : i32
    %c0_i32_0 = arith.constant 0 : i32
    %c0_i32_1 = arith.constant 0 : i32
    return %c0_i32, %c0_i32_0 : i32, i32
  }
  func.func @transform_5(%arg0: i32) -> (i32, i32) {
    %c0_i32 = arith.constant 0 : i32
    %c0_i32_0 = arith.constant 0 : i32
    return %arg0, %c0_i32 : i32, i32
  }
}

module attributes {stable_mosaic.version = 11 : i64} {
  func.func @mlp_kernel(%arg0: i32, %arg1: memref<8x128xbf16, #tpu.memory_space<vmem>>, %arg2: memref<128x128xbf16, #tpu.memory_space<vmem>>, %arg3: memref<1x128xf32, #tpu.memory_space<vmem>>, %arg4: memref<128x128xbf16, #tpu.memory_space<vmem>>, %arg5: memref<1x128xf32, #tpu.memory_space<vmem>>, %arg6: memref<8x128xf32, #tpu.memory_space<vmem>>) attributes {dimension_semantics = [#tpu.dimension_semantics<parallel>], iteration_bounds = array<i64: 1>, scalar_prefetch = 0 : i64, scratch_operands = 0 : i64, tpu.core_type = #tpu.core_type<tc>, window_params = [{transform_indices = @transform_0, window_bounds = array<i64: 8, 128>}, {pipeline_mode = #tpu.pipeline_mode<synchronous>, transform_indices = @transform_1, window_bounds = array<i64: 128, 128>}, {pipeline_mode = #tpu.pipeline_mode<synchronous>, transform_indices = @transform_2, window_bounds = array<i64: 1, 128>}, {pipeline_mode = #tpu.pipeline_mode<synchronous>, transform_indices = @transform_3, window_bounds = array<i64: 128, 128>}, {pipeline_mode = #tpu.pipeline_mode<synchronous>, transform_indices = @transform_4, window_bounds = array<i64: 1, 128>}, {transform_indices = @transform_5, window_bounds = array<i64: 8, 128>}]} {
    %c0 = arith.constant 0 : index
    %c0_0 = arith.constant 0 : index
    %0 = vector.load %arg1[%c0, %c0_0] : memref<8x128xbf16, #tpu.memory_space<vmem>>, vector<8x128xbf16>
    %c0_1 = arith.constant 0 : index
    %c0_2 = arith.constant 0 : index
    %1 = vector.load %arg2[%c0_1, %c0_2] : memref<128x128xbf16, #tpu.memory_space<vmem>>, vector<128x128xbf16>
    %cst = arith.constant dense<0.000000e+00> : vector<8x128xf32>
    %2 = tpu.matmul %0, %1, %cst {dimension_numbers = #tpu.dot_dimension_numbers<[1], [0], [0], [1], [0, 0, 1, 1], [], []>} : vector<8x128xbf16>, vector<128x128xbf16>, vector<8x128xf32> -> vector<8x128xf32>
    %c0_3 = arith.constant 0 : index
    %c0_4 = arith.constant 0 : index
    %3 = vector.load %arg3[%c0_3, %c0_4] : memref<1x128xf32, #tpu.memory_space<vmem>>, vector<1x128xf32>
    %4 = vector.broadcast %3 : vector<1x128xf32> to vector<8x128xf32>
    %5 = arith.addf %2, %4 : vector<8x128xf32>
    %cst_5 = arith.constant 0.000000e+00 : f32
    %6 = vector.broadcast %cst_5 : f32 to vector<8x128xf32>
    %7 = arith.maximumf %5, %6 : vector<8x128xf32>
    %8 = arith.truncf %7 : vector<8x128xf32> to vector<8x128xbf16>
    %c0_6 = arith.constant 0 : index
    %c0_7 = arith.constant 0 : index
    %9 = vector.load %arg4[%c0_6, %c0_7] : memref<128x128xbf16, #tpu.memory_space<vmem>>, vector<128x128xbf16>
    %cst_8 = arith.constant dense<0.000000e+00> : vector<8x128xf32>
    %10 = tpu.matmul %8, %9, %cst_8 {dimension_numbers = #tpu.dot_dimension_numbers<[1], [0], [0], [1], [0, 0, 1, 1], [], []>} : vector<8x128xbf16>, vector<128x128xbf16>, vector<8x128xf32> -> vector<8x128xf32>
    %c0_9 = arith.constant 0 : index
    %c0_10 = arith.constant 0 : index
    %11 = vector.load %arg5[%c0_9, %c0_10] : memref<1x128xf32, #tpu.memory_space<vmem>>, vector<1x128xf32>
    %12 = vector.broadcast %11 : vector<1x128xf32> to vector<8x128xf32>
    %13 = arith.addf %10, %12 : vector<8x128xf32>
    %c0_11 = arith.constant 0 : index
    %c0_12 = arith.constant 0 : index
    %14 = vector.load %arg6[%c0_11, %c0_12] : memref<8x128xf32, #tpu.memory_space<vmem>>, vector<8x128xf32>
    tpu.vector_store %arg6[%c0_11, %c0_12], %13 {strides = array<i32>} : memref<8x128xf32, #tpu.memory_space<vmem>>, vector<8x128xf32>,
    return
  }
  func.func @transform_0(%arg0: i32) -> (i32, i32) {
    %c0_i32 = arith.constant 0 : i32
    %c0_i32_0 = arith.constant 0 : i32
    return %arg0, %c0_i32 : i32, i32
  }
  func.func @transform_1(%arg0: i32) -> (i32, i32) {
    %c0_i32 = arith.constant 0 : i32
    %c0_i32_0 = arith.constant 0 : i32
    %c0_i32_1 = arith.constant 0 : i32
    return %c0_i32, %c0_i32_0 : i32, i32
  }
  func.func @transform_2(%arg0: i32) -> (i32, i32) {
    %c0_i32 = arith.constant 0 : i32
    %c0_i32_0 = arith.constant 0 : i32
    %c0_i32_1 = arith.constant 0 : i32
    return %c0_i32, %c0_i32_0 : i32, i32
  }
  func.func @transform_3(%arg0: i32) -> (i32, i32) {
    %c0_i32 = arith.constant 0 : i32
    %c0_i32_0 = arith.constant 0 : i32
    %c0_i32_1 = arith.constant 0 : i32
    return %c0_i32, %c0_i32_0 : i32, i32
  }
  func.func @transform_4(%arg0: i32) -> (i32, i32) {
    %c0_i32 = arith.constant 0 : i32
    %c0_i32_0 = arith.constant 0 : i32
    %c0_i32_1 = arith.constant 0 : i32
    return %c0_i32, %c0_i32_0 : i32, i32
  }
  func.func @transform_5(%arg0: i32) -> (i32, i32) {
    %c0_i32 = arith.constant 0 : i32
    %c0_i32_0 = arith.constant 0 : i32
    return %arg0, %c0_i32 : i32, i32
  }
}

</mosaic_0001>

<llo_original>
// kernel: tpu_custom_call.1
$region0: #{tpu_custom_call.1}
  #allocation0 [shape = 'u32[]', space=smem, size = 0x4, offset = 0x4, fixed_abs, tag = 'smem constant byte address 0x4 - core index']
  #allocation1 [shape = 'u32[72,128]{1,0:T(1,128)}', space=vmem, size = 0x9000, scoped, tag = 'internal scratch']
  %s0 = inlined_call_operand.hbm [shape: bf16[8,128], index: 0, kind: input, shape index: {}]
  %s1 = inlined_call_operand.hbm [shape: bf16[128,128], index: 1, kind: input, shape index: {}]
  %s2 = inlined_call_operand.vmem [shape: f32[1,128], index: 2, kind: input, shape index: {}]
  %s3 = inlined_call_operand.hbm [shape: bf16[128,128], index: 3, kind: input, shape index: {}]
  %s4 = inlined_call_operand.vmem [shape: f32[1,128], index: 4, kind: input, shape index: {}]
  %s5 = inlined_call_operand.hbm [shape: f32[8,128], index: 5, kind: output, shape index: {}]
  %s6 = sld [smem:[#allocation0]]
  $region42: #{tpu_custom_call.1} parent=0
    _
  %s8 = ssub.s32 1, %s6
  %s9 = scalar_select 0, %s8, %s6
  $region1: #{tpu_custom_call.1} parent=0
    #allocation2 [shape = 'u8[2048]{0}', space=vmem, size = 0x800, scoped, tag = 'input window, operand 0, single buffered']
    #allocation3 [shape = 's32[1]{0}', space=sflag, size = 0x4, scoped, tag = 'scoped memory for tpu_custom_call.1']
    #allocation4 [shape = 's32[1]{0}', space=sflag, size = 0x4, scoped, tag = 'scoped memory for tpu_custom_call.1']
    #allocation5 [shape = 'u8[32768]{0}', space=vmem, size = 0x8000, scoped, tag = 'input window, operand 1, single buffered']
    #allocation6 [shape = 's32[1]{0}', space=sflag, size = 0x4, scoped, tag = 'scoped memory for tpu_custom_call.1']
    #allocation7 [shape = 'u8[32768]{0}', space=vmem, size = 0x8000, scoped, tag = 'input window, operand 3, single buffered']
    #allocation8 [shape = 'u8[4096]{0}', space=vmem, size = 0x1000, scoped, tag = 'output window, operand 0, single buffered']
    %10 = vsyncpa [#allocation3], 0
    %11 = vsyncpa [#allocation6], 0
    %12 = vsyncpa [#allocation4], 0
    // Predicated region
    $region2: #{tpu_custom_call.1} parent=1 // pred_check
      _
    $region3: #{tpu_custom_call.1} parent=1 // pred_check_branch
      %14 = sbr.rel (0) target = $region5
    $region4: #{tpu_custom_call.1} parent=1 // pred_region
      %16 = vsyncadd [#allocation3], 0
      %s18 = sshll.u32 %s0, 4
      %s19 = int_to_ptr.hbm [resolvable:$true] %s18
      %s20 = sshll.u32 [#allocation2], 4
      %s21 = int_to_ptr.vmem [resolvable:$true] %s20
      %23 = dma.hbm_to_vmem [thread:$0]  %s19, 64, %s21, [#allocation3]
    $region5: #{tpu_custom_call.1} parent=1 // pred_fallthru
      _
    // Predicated region
    $region6: #{tpu_custom_call.1} parent=1 // pred_check
      _
    $region7: #{tpu_custom_call.1} parent=1 // pred_check_branch
      %25 = sbr.rel (0) target = $region9
    $region8: #{tpu_custom_call.1} parent=1 // pred_region
      %27 = vsyncadd [#allocation6], 0
      %s28 = sshll.u32 %s1, 4
      %s29 = int_to_ptr.hbm [resolvable:$true] %s28
      %s30 = sshll.u32 [#allocation5], 4
      %s31 = int_to_ptr.vmem [resolvable:$true] %s30
      %36 = dma.hbm_to_vmem [thread:$0]  %s29, 1024, %s31, [#allocation6], 64, 64, 4
    $region9: #{tpu_custom_call.1} parent=1 // pred_fallthru
      _
    // Predicated region
    $region10: #{tpu_custom_call.1} parent=1 // pred_check
      _
    $region11: #{tpu_custom_call.1} parent=1 // pred_check_branch
      %38 = sbr.rel (0) target = $region13
    $region12: #{tpu_custom_call.1} parent=1 // pred_region
      _
    $region13: #{tpu_custom_call.1} parent=1 // pred_fallthru
      _
    // Predicated region
    $region14: #{tpu_custom_call.1} parent=1 // pred_check
      _
    $region15: #{tpu_custom_call.1} parent=1 // pred_check_branch
      %40 = sbr.rel (0) target = $region17
    $region16: #{tpu_custom_call.1} parent=1 // pred_region
      %42 = vsyncadd [#allocation6], 0
      %s43 = sshll.u32 %s3, 4
      %s44 = int_to_ptr.hbm [resolvable:$true] %s43
      %s45 = sshll.u32 [#allocation7], 4
      %s46 = int_to_ptr.vmem [resolvable:$true] %s45
      %51 = dma.hbm_to_vmem [thread:$0]  %s44, 1024, %s46, [#allocation6], 64, 64, 4
    $region17: #{tpu_custom_call.1} parent=1 // pred_fallthru
      _
    // Predicated region
    $region18: #{tpu_custom_call.1} parent=1 // pred_check
      _
    $region19: #{tpu_custom_call.1} parent=1 // pred_check_branch
      %53 = sbr.rel (0) target = $region21
    $region20: #{tpu_custom_call.1} parent=1 // pred_region
      _
    $region21: #{tpu_custom_call.1} parent=1 // pred_fallthru
      _
    // Predicated region
    $region22: #{tpu_custom_call.1} parent=1 // pred_check
      _
    $region23: #{tpu_custom_call.1} parent=1 // pred_check_branch
      %55 = sbr.rel (0) target = $region25
    $region24: #{tpu_custom_call.1} parent=1 // pred_region
      %57 = dma.done [#allocation3], 64
    $region25: #{tpu_custom_call.1} parent=1 // pred_fallthru
      _
    // Predicated region
    $region26: #{tpu_custom_call.1} parent=1 // pred_check
      _
    $region27: #{tpu_custom_call.1} parent=1 // pred_check_branch
      %59 = sbr.rel (0) target = $region29
    $region28: #{tpu_custom_call.1} parent=1 // pred_region
      %61 = dma.done [#allocation6], 1024
    $region29: #{tpu_custom_call.1} parent=1 // pred_fallthru
      _
    // Predicated region
    $region30: #{tpu_custom_call.1} parent=1 // pred_check
      _
    $region31: #{tpu_custom_call.1} parent=1 // pred_check_branch
      %63 = sbr.rel (0) target = $region33
    $region32: #{tpu_custom_call.1} parent=1 // pred_region
      %65 = dma.done [#allocation6], 1024
    $region33: #{tpu_custom_call.1} parent=1 // pred_fallthru
      _
    %v66 = vld [vmem:[#allocation2] sm:$0xf]
    %v67 = vld [vmem:[#allocation5] sm:$0xf]
    %v68 = vld [vmem:[#allocation5 + $0x4] sm:$0xf]
    %v69 = vld [vmem:[#allocation5 + $0x8] sm:$0xf]
    %v70 = vld [vmem:[#allocation5 + $0xc] sm:$0xf]
    %v71 = vld [vmem:[#allocation5 + $0x10] sm:$0xf]
    %v72 = vld [vmem:[#allocation5 + $0x14] sm:$0xf]
    %v73 = vld [vmem:[#allocation5 + $0x18] sm:$0xf]
    %v74 = vld [vmem:[#allocation5 + $0x1c] sm:$0xf]
    %v75 = vld [vmem:[#allocation5 + $0x20] sm:$0xf]
    %v76 = vld [vmem:[#allocation5 + $0x24] sm:$0xf]
    %v77 = vld [vmem:[#allocation5 + $0x28] sm:$0xf]
    %v78 = vld [vmem:[#allocation5 + $0x2c] sm:$0xf]
    %v79 = vld [vmem:[#allocation5 + $0x30] sm:$0xf]
    %v80 = vld [vmem:[#allocation5 + $0x34] sm:$0xf]
    %v81 = vld [vmem:[#allocation5 + $0x38] sm:$0xf]
    %v82 = vld [vmem:[#allocation5 + $0x3c] sm:$0xf]
    %v83 = vld [vmem:[%s2] sm:$0x1]
    %v85 = vperm.slane %v83, 0
    %v103 = vunpack.c.l.b16 %v67
    %v104 = vunpack.c.l.b16 %v68
    %v105 = vunpack.c.l.b16 %v69
    %v106 = vunpack.c.l.b16 %v70
    %v107 = vunpack.c.l.b16 %v71
    %v108 = vunpack.c.l.b16 %v72
    %v109 = vunpack.c.l.b16 %v73
    %v110 = vunpack.c.l.b16 %v74
    %v111 = vunpack.c.l.b16 %v75
    %v112 = vunpack.c.l.b16 %v76
    %v113 = vunpack.c.l.b16 %v77
    %v114 = vunpack.c.l.b16 %v78
    %v115 = vunpack.c.l.b16 %v79
    %v116 = vunpack.c.l.b16 %v80
    %v117 = vunpack.c.l.b16 %v81
    %v118 = vunpack.c.l.b16 %v82
    %v119 = vpack.c.b16 %v104, %v103
    %v120 = vpack.c.b16 %v106, %v105
    %v121 = vpack.c.b16 %v108, %v107
    %v122 = vpack.c.b16 %v110, %v109
    %v123 = vpack.c.b16 %v112, %v111
    %v124 = vpack.c.b16 %v114, %v113
    %v125 = vpack.c.b16 %v116, %v115
    %v126 = vpack.c.b16 %v118, %v117
    %135 = vmatpush.bf16.msra.mxu0 %v126
    %136 = vmatpush.bf16.msra.mxu0 %v125
    %137 = vmatpush.bf16.msra.mxu0 %v124
    %138 = vmatpush.bf16.msra.mxu0 %v123
    %139 = vmatpush.bf16.msra.mxu0 %v122
    %140 = vmatpush.bf16.msra.mxu0 %v121
    %141 = vmatpush.bf16.msra.mxu0 %v120
    %142 = vmatpush.bf16.msra.mxu0 %v119
    %143 = vmatmul.bf16.gmra.mxu0 %v66
    %v144 = vpop.f32.mrf.mxu0
    %v145 = vadd.f32 %v85, %v144
    %v146 = vpop.f32.mrf.mxu0
    %147 = vdwg.mxu0
    %v148 = vmax.f32 %v145, 0.0
    %v149 = vpack.c.bf16 %v148, %v148
    %v150 = vld [vmem:[#allocation7] sm:$0xf]
    %v151 = vld [vmem:[#allocation7 + $0x4] sm:$0xf]
    %v152 = vld [vmem:[#allocation7 + $0x8] sm:$0xf]
    %v153 = vld [vmem:[#allocation7 + $0xc] sm:$0xf]
    %v154 = vld [vmem:[#allocation7 + $0x10] sm:$0xf]
    %v155 = vld [vmem:[#allocation7 + $0x14] sm:$0xf]
    %v156 = vld [vmem:[#allocation7 + $0x18] sm:$0xf]
    %v157 = vld [vmem:[#allocation7 + $0x1c] sm:$0xf]
    %v158 = vld [vmem:[#allocation7 + $0x20] sm:$0xf]
    %v159 = vld [vmem:[#allocation7 + $0x24] sm:$0xf]
    %v160 = vld [vmem:[#allocation7 + $0x28] sm:$0xf]
    %v161 = vld [vmem:[#allocation7 + $0x2c] sm:$0xf]
    %v162 = vld [vmem:[#allocation7 + $0x30] sm:$0xf]
    %v163 = vld [vmem:[#allocation7 + $0x34] sm:$0xf]
    %v164 = vld [vmem:[#allocation7 + $0x38] sm:$0xf]
    %v165 = vld [vmem:[#allocation7 + $0x3c] sm:$0xf]
    %v166 = vld [vmem:[%s4] sm:$0x1]
    %v168 = vperm.slane %v166, 0
    %v186 = vunpack.c.l.b16 %v150
    %v187 = vunpack.c.l.b16 %v151
    %v188 = vunpack.c.l.b16 %v152
    %v189 = vunpack.c.l.b16 %v153
    %v190 = vunpack.c.l.b16 %v154
    %v191 = vunpack.c.l.b16 %v155
    %v192 = vunpack.c.l.b16 %v156
    %v193 = vunpack.c.l.b16 %v157
    %v194 = vunpack.c.l.b16 %v158
    %v195 = vunpack.c.l.b16 %v159
    %v196 = vunpack.c.l.b16 %v160
    %v197 = vunpack.c.l.b16 %v161
    %v198 = vunpack.c.l.b16 %v162
    %v199 = vunpack.c.l.b16 %v163
    %v200 = vunpack.c.l.b16 %v164
    %v201 = vunpack.c.l.b16 %v165
    %v202 = vpack.c.b16 %v187, %v186
    %v203 = vpack.c.b16 %v189, %v188
    %v204 = vpack.c.b16 %v191, %v190
    %v205 = vpack.c.b16 %v193, %v192
    %v206 = vpack.c.b16 %v195, %v194
    %v207 = vpack.c.b16 %v197, %v196
    %v208 = vpack.c.b16 %v199, %v198
    %v209 = vpack.c.b16 %v201, %v200
    %218 = vmatpush.bf16.msra.mxu0 %v209
    %219 = vmatpush.bf16.msra.mxu0 %v208
    %220 = vmatpush.bf16.msra.mxu0 %v207
    %221 = vmatpush.bf16.msra.mxu0 %v206
    %222 = vmatpush.bf16.msra.mxu0 %v205
    %223 = vmatpush.bf16.msra.mxu0 %v204
    %224 = vmatpush.bf16.msra.mxu0 %v203
    %225 = vmatpush.bf16.msra.mxu0 %v202
    %226 = vmatmul.bf16.gmra.mxu0 %v149
    %v227 = vpop.f32.mrf.mxu0
    %v228 = vadd.f32 %v168, %v227
    %v229 = vpop.f32.mrf.mxu0
    %230 = vdwg.mxu0
    %231 = vst [vmem:[#allocation8] sm:$0xff] %v228
    // Predicated region
    $region34: #{tpu_custom_call.1} parent=1 // pred_check
      _
    $region35: #{tpu_custom_call.1} parent=1 // pred_check_branch
      %233 = sbr.rel (0) target = $region37
    $region36: #{tpu_custom_call.1} parent=1 // pred_region
      %235 = vsyncadd [#allocation4], 0
      %s237 = sshll.u32 [#allocation8], 4
      %s238 = int_to_ptr.vmem [resolvable:$true] %s237
      %s239 = sshll.u32 %s5, 4
      %s240 = int_to_ptr.hbm [resolvable:$true] %s239
      %242 = dma.vmem_to_hbm [thread:$0]  %s238, 128, %s240, [#allocation4]
    $region37: #{tpu_custom_call.1} parent=1 // pred_fallthru
      _
    // Predicated region
    $region38: #{tpu_custom_call.1} parent=1 // pred_check
      _
    $region39: #{tpu_custom_call.1} parent=1 // pred_check_branch
      %244 = sbr.rel (0) target = $region41
    $region40: #{tpu_custom_call.1} parent=1 // pred_region
      %246 = dma.done [#allocation4], 128
    $region41: #{tpu_custom_call.1} parent=1 // pred_fallthru
      _
    %247 = vsyncpa [#allocation3], 1
    %248 = vsyncpa [#allocation6], 1
    %249 = vsyncpa [#allocation4], 1

// kernel: tpu_custom_call.1
$region0: #{tpu_custom_call.1}
  #allocation0 [shape = 'u32[]', space=smem, size = 0x4, offset = 0x4, fixed_abs, tag = 'smem constant byte address 0x4 - core index']
  #allocation1 [shape = 'u32[72,128]{1,0:T(1,128)}', space=vmem, size = 0x9000, scoped, tag = 'internal scratch']
  %s0 = inlined_call_operand.hbm [shape: bf16[8,128], index: 0, kind: input, shape index: {}]
  %s1 = inlined_call_operand.hbm [shape: bf16[128,128], index: 1, kind: input, shape index: {}]
  %s2 = inlined_call_operand.vmem [shape: f32[1,128], index: 2, kind: input, shape index: {}]
  %s3 = inlined_call_operand.hbm [shape: bf16[128,128], index: 3, kind: input, shape index: {}]
  %s4 = inlined_call_operand.vmem [shape: f32[1,128], index: 4, kind: input, shape index: {}]
  %s5 = inlined_call_operand.hbm [shape: f32[8,128], index: 5, kind: output, shape index: {}]
  %s6 = sld [smem:[#allocation0]]
  $region42: #{tpu_custom_call.1} parent=0
    _
  %s8 = ssub.s32 1, %s6
  %s9 = scalar_select 0, %s8, %s6
  $region1: #{tpu_custom_call.1} parent=0
    #allocation2 [shape = 'u8[2048]{0}', space=vmem, size = 0x800, scoped, tag = 'input window, operand 0, single buffered']
    #allocation3 [shape = 's32[1]{0}', space=sflag, size = 0x4, scoped, tag = 'scoped memory for tpu_custom_call.1']
    #allocation4 [shape = 's32[1]{0}', space=sflag, size = 0x4, scoped, tag = 'scoped memory for tpu_custom_call.1']
    #allocation5 [shape = 'u8[32768]{0}', space=vmem, size = 0x8000, scoped, tag = 'input window, operand 1, single buffered']
    #allocation6 [shape = 's32[1]{0}', space=sflag, size = 0x4, scoped, tag = 'scoped memory for tpu_custom_call.1']
    #allocation7 [shape = 'u8[32768]{0}', space=vmem, size = 0x8000, scoped, tag = 'input window, operand 3, single buffered']
    #allocation8 [shape = 'u8[4096]{0}', space=vmem, size = 0x1000, scoped, tag = 'output window, operand 0, single buffered']
    %10 = vsyncpa [#allocation3], 0
    %11 = vsyncpa [#allocation6], 0
    %12 = vsyncpa [#allocation4], 0
    // Predicated region
    $region2: #{tpu_custom_call.1} parent=1 // pred_check
      _
    $region3: #{tpu_custom_call.1} parent=1 // pred_check_branch
      %14 = sbr.rel (0) target = $region5
    $region4: #{tpu_custom_call.1} parent=1 // pred_region
      %16 = vsyncadd [#allocation3], 0
      %s18 = sshll.u32 %s0, 4
      %s19 = int_to_ptr.hbm [resolvable:$true] %s18
      %s20 = sshll.u32 [#allocation2], 4
      %s21 = int_to_ptr.vmem [resolvable:$true] %s20
      %23 = dma.hbm_to_vmem [thread:$0]  %s19, 64, %s21, [#allocation3]
    $region5: #{tpu_custom_call.1} parent=1 // pred_fallthru
      _
    // Predicated region
    $region6: #{tpu_custom_call.1} parent=1 // pred_check
      _
    $region7: #{tpu_custom_call.1} parent=1 // pred_check_branch
      %25 = sbr.rel (0) target = $region9
    $region8: #{tpu_custom_call.1} parent=1 // pred_region
      %27 = vsyncadd [#allocation6], 0
      %s28 = sshll.u32 %s1, 4
      %s29 = int_to_ptr.hbm [resolvable:$true] %s28
      %s30 = sshll.u32 [#allocation5], 4
      %s31 = int_to_ptr.vmem [resolvable:$true] %s30
      %36 = dma.hbm_to_vmem [thread:$0]  %s29, 1024, %s31, [#allocation6], 64, 64, 4
    $region9: #{tpu_custom_call.1} parent=1 // pred_fallthru
      _
    // Predicated region
    $region10: #{tpu_custom_call.1} parent=1 // pred_check
      _
    $region11: #{tpu_custom_call.1} parent=1 // pred_check_branch
      %38 = sbr.rel (0) target = $region13
    $region12: #{tpu_custom_call.1} parent=1 // pred_region
      _
    $region13: #{tpu_custom_call.1} parent=1 // pred_fallthru
      _
    // Predicated region
    $region14: #{tpu_custom_call.1} parent=1 // pred_check
      _
    $region15: #{tpu_custom_call.1} parent=1 // pred_check_branch
      %40 = sbr.rel (0) target = $region17
    $region16: #{tpu_custom_call.1} parent=1 // pred_region
      %42 = vsyncadd [#allocation6], 0
      %s43 = sshll.u32 %s3, 4
      %s44 = int_to_ptr.hbm [resolvable:$true] %s43
      %s45 = sshll.u32 [#allocation7], 4
      %s46 = int_to_ptr.vmem [resolvable:$true] %s45
      %51 = dma.hbm_to_vmem [thread:$0]  %s44, 1024, %s46, [#allocation6], 64, 64, 4
    $region17: #{tpu_custom_call.1} parent=1 // pred_fallthru
      _
    // Predicated region
    $region18: #{tpu_custom_call.1} parent=1 // pred_check
      _
    $region19: #{tpu_custom_call.1} parent=1 // pred_check_branch
      %53 = sbr.rel (0) target = $region21
    $region20: #{tpu_custom_call.1} parent=1 // pred_region
      _
    $region21: #{tpu_custom_call.1} parent=1 // pred_fallthru
      _
    // Predicated region
    $region22: #{tpu_custom_call.1} parent=1 // pred_check
      _
    $region23: #{tpu_custom_call.1} parent=1 // pred_check_branch
      %55 = sbr.rel (0) target = $region25
    $region24: #{tpu_custom_call.1} parent=1 // pred_region
      %57 = dma.done [#allocation3], 64
    $region25: #{tpu_custom_call.1} parent=1 // pred_fallthru
      _
    // Predicated region
    $region26: #{tpu_custom_call.1} parent=1 // pred_check
      _
    $region27: #{tpu_custom_call.1} parent=1 // pred_check_branch
      %59 = sbr.rel (0) target = $region29
    $region28: #{tpu_custom_call.1} parent=1 // pred_region
      %61 = dma.done [#allocation6], 1024
    $region29: #{tpu_custom_call.1} parent=1 // pred_fallthru
      _
    // Predicated region
    $region30: #{tpu_custom_call.1} parent=1 // pred_check
      _
    $region31: #{tpu_custom_call.1} parent=1 // pred_check_branch
      %63 = sbr.rel (0) target = $region33
    $region32: #{tpu_custom_call.1} parent=1 // pred_region
      %65 = dma.done [#allocation6], 1024
    $region33: #{tpu_custom_call.1} parent=1 // pred_fallthru
      _
    %v66 = vld [vmem:[#allocation2] sm:$0xf]
    %v67 = vld [vmem:[#allocation5] sm:$0xf]
    %v68 = vld [vmem:[#allocation5 + $0x4] sm:$0xf]
    %v69 = vld [vmem:[#allocation5 + $0x8] sm:$0xf]
    %v70 = vld [vmem:[#allocation5 + $0xc] sm:$0xf]
    %v71 = vld [vmem:[#allocation5 + $0x10] sm:$0xf]
    %v72 = vld [vmem:[#allocation5 + $0x14] sm:$0xf]
    %v73 = vld [vmem:[#allocation5 + $0x18] sm:$0xf]
    %v74 = vld [vmem:[#allocation5 + $0x1c] sm:$0xf]
    %v75 = vld [vmem:[#allocation5 + $0x20] sm:$0xf]
    %v76 = vld [vmem:[#allocation5 + $0x24] sm:$0xf]
    %v77 = vld [vmem:[#allocation5 + $0x28] sm:$0xf]
    %v78 = vld [vmem:[#allocation5 + $0x2c] sm:$0xf]
    %v79 = vld [vmem:[#allocation5 + $0x30] sm:$0xf]
    %v80 = vld [vmem:[#allocation5 + $0x34] sm:$0xf]
    %v81 = vld [vmem:[#allocation5 + $0x38] sm:$0xf]
    %v82 = vld [vmem:[#allocation5 + $0x3c] sm:$0xf]
    %v83 = vld [vmem:[%s2] sm:$0x1]
    %v85 = vperm.slane %v83, 0
    %v103 = vunpack.c.l.b16 %v67
    %v104 = vunpack.c.l.b16 %v68
    %v105 = vunpack.c.l.b16 %v69
    %v106 = vunpack.c.l.b16 %v70
    %v107 = vunpack.c.l.b16 %v71
    %v108 = vunpack.c.l.b16 %v72
    %v109 = vunpack.c.l.b16 %v73
    %v110 = vunpack.c.l.b16 %v74
    %v111 = vunpack.c.l.b16 %v75
    %v112 = vunpack.c.l.b16 %v76
    %v113 = vunpack.c.l.b16 %v77
    %v114 = vunpack.c.l.b16 %v78
    %v115 = vunpack.c.l.b16 %v79
    %v116 = vunpack.c.l.b16 %v80
    %v117 = vunpack.c.l.b16 %v81
    %v118 = vunpack.c.l.b16 %v82
    %v119 = vpack.c.b16 %v104, %v103
    %v120 = vpack.c.b16 %v106, %v105
    %v121 = vpack.c.b16 %v108, %v107
    %v122 = vpack.c.b16 %v110, %v109
    %v123 = vpack.c.b16 %v112, %v111
    %v124 = vpack.c.b16 %v114, %v113
    %v125 = vpack.c.b16 %v116, %v115
    %v126 = vpack.c.b16 %v118, %v117
    %135 = vmatpush.bf16.msra.mxu0 %v126
    %136 = vmatpush.bf16.msra.mxu0 %v125
    %137 = vmatpush.bf16.msra.mxu0 %v124
    %138 = vmatpush.bf16.msra.mxu0 %v123
    %139 = vmatpush.bf16.msra.mxu0 %v122
    %140 = vmatpush.bf16.msra.mxu0 %v121
    %141 = vmatpush.bf16.msra.mxu0 %v120
    %142 = vmatpush.bf16.msra.mxu0 %v119
    %143 = vmatmul.bf16.gmra.mxu0 %v66
    %v144 = vpop.f32.mrf.mxu0
    %v145 = vadd.f32 %v85, %v144
    %v146 = vpop.f32.mrf.mxu0
    %147 = vdwg.mxu0
    %v148 = vmax.f32 %v145, 0.0
    %v149 = vpack.c.bf16 %v148, %v148
    %v150 = vld [vmem:[#allocation7] sm:$0xf]
    %v151 = vld [vmem:[#allocation7 + $0x4] sm:$0xf]
    %v152 = vld [vmem:[#allocation7 + $0x8] sm:$0xf]
    %v153 = vld [vmem:[#allocation7 + $0xc] sm:$0xf]
    %v154 = vld [vmem:[#allocation7 + $0x10] sm:$0xf]
    %v155 = vld [vmem:[#allocation7 + $0x14] sm:$0xf]
    %v156 = vld [vmem:[#allocation7 + $0x18] sm:$0xf]
    %v157 = vld [vmem:[#allocation7 + $0x1c] sm:$0xf]
    %v158 = vld [vmem:[#allocation7 + $0x20] sm:$0xf]
    %v159 = vld [vmem:[#allocation7 + $0x24] sm:$0xf]
    %v160 = vld [vmem:[#allocation7 + $0x28] sm:$0xf]
    %v161 = vld [vmem:[#allocation7 + $0x2c] sm:$0xf]
    %v162 = vld [vmem:[#allocation7 + $0x30] sm:$0xf]
    %v163 = vld [vmem:[#allocation7 + $0x34] sm:$0xf]
    %v164 = vld [vmem:[#allocation7 + $0x38] sm:$0xf]
    %v165 = vld [vmem:[#allocation7 + $0x3c] sm:$0xf]
    %v166 = vld [vmem:[%s4] sm:$0x1]
    %v168 = vperm.slane %v166, 0
    %v186 = vunpack.c.l.b16 %v150
    %v187 = vunpack.c.l.b16 %v151
    %v188 = vunpack.c.l.b16 %v152
    %v189 = vunpack.c.l.b16 %v153
    %v190 = vunpack.c.l.b16 %v154
    %v191 = vunpack.c.l.b16 %v155
    %v192 = vunpack.c.l.b16 %v156
    %v193 = vunpack.c.l.b16 %v157
    %v194 = vunpack.c.l.b16 %v158
    %v195 = vunpack.c.l.b16 %v159
    %v196 = vunpack.c.l.b16 %v160
    %v197 = vunpack.c.l.b16 %v161
    %v198 = vunpack.c.l.b16 %v162
    %v199 = vunpack.c.l.b16 %v163
    %v200 = vunpack.c.l.b16 %v164
    %v201 = vunpack.c.l.b16 %v165
    %v202 = vpack.c.b16 %v187, %v186
    %v203 = vpack.c.b16 %v189, %v188
    %v204 = vpack.c.b16 %v191, %v190
    %v205 = vpack.c.b16 %v193, %v192
    %v206 = vpack.c.b16 %v195, %v194
    %v207 = vpack.c.b16 %v197, %v196
    %v208 = vpack.c.b16 %v199, %v198
    %v209 = vpack.c.b16 %v201, %v200
    %218 = vmatpush.bf16.msra.mxu0 %v209
    %219 = vmatpush.bf16.msra.mxu0 %v208
    %220 = vmatpush.bf16.msra.mxu0 %v207
    %221 = vmatpush.bf16.msra.mxu0 %v206
    %222 = vmatpush.bf16.msra.mxu0 %v205
    %223 = vmatpush.bf16.msra.mxu0 %v204
    %224 = vmatpush.bf16.msra.mxu0 %v203
    %225 = vmatpush.bf16.msra.mxu0 %v202
    %226 = vmatmul.bf16.gmra.mxu0 %v149
    %v227 = vpop.f32.mrf.mxu0
    %v228 = vadd.f32 %v168, %v227
    %v229 = vpop.f32.mrf.mxu0
    %230 = vdwg.mxu0
    %231 = vst [vmem:[#allocation8] sm:$0xff] %v228
    // Predicated region
    $region34: #{tpu_custom_call.1} parent=1 // pred_check
      _
    $region35: #{tpu_custom_call.1} parent=1 // pred_check_branch
      %233 = sbr.rel (0) target = $region37
    $region36: #{tpu_custom_call.1} parent=1 // pred_region
      %235 = vsyncadd [#allocation4], 0
      %s237 = sshll.u32 [#allocation8], 4
      %s238 = int_to_ptr.vmem [resolvable:$true] %s237
      %s239 = sshll.u32 %s5, 4
      %s240 = int_to_ptr.hbm [resolvable:$true] %s239
      %242 = dma.vmem_to_hbm [thread:$0]  %s238, 128, %s240, [#allocation4]
    $region37: #{tpu_custom_call.1} parent=1 // pred_fallthru
      _
    // Predicated region
    $region38: #{tpu_custom_call.1} parent=1 // pred_check
      _
    $region39: #{tpu_custom_call.1} parent=1 // pred_check_branch
      %244 = sbr.rel (0) target = $region41
    $region40: #{tpu_custom_call.1} parent=1 // pred_region
      %246 = dma.done [#allocation4], 128
    $region41: #{tpu_custom_call.1} parent=1 // pred_fallthru
      _
    %247 = vsyncpa [#allocation3], 1
    %248 = vsyncpa [#allocation6], 1
    %249 = vsyncpa [#allocation4], 1

</llo_original>
